<compile_context>
chip_gen: v7x
topology: tpu7x:2x2x1
jax: 0.10.0
libtpu: 0.0.40
codegen_flags: <defaults>
</compile_context>

<pallas_src>
import functools

import jax
import jax.numpy as jnp
from jax.experimental import pallas as pl
from jax.experimental.pallas import tpu as pltpu

_LANE = 128


def _round_up(n, m):
    return ((n + m - 1) // m) * m


def _pad2(a, rows, cols):
    return jnp.pad(a, ((0, rows - a.shape[0]), (0, cols - a.shape[1])))


def _dqn_kernel(x_ref, w_ref, b_ref, out_ref):
    """x_ref: (TB, P) f32, w_ref: (3, P, P) bf16, b_ref: (8, P) f32,
    out_ref: (TB, P) f32.  Padded lanes of the weights are exactly zero, so the
    padded hidden lanes stay 0 through the ReLUs."""
    cdt = w_ref.dtype
    b = b_ref[...]                       # one load; rows 0..2 are b1/b2/b3
    x = x_ref[...].astype(cdt)           # in-kernel f32->bf16 cast (hides under DMA)

    # fc1 + relu: bf16 operands, f32 MXU accumulate, f32 bias add.
    h1 = jnp.dot(x, w_ref[0], preferred_element_type=jnp.float32)
    h1 = jnp.maximum(h1 + b[0:1, :], 0.0)
    # fc2 + relu
    h2 = jnp.dot(h1.astype(cdt), w_ref[1], preferred_element_type=jnp.float32)
    h2 = jnp.maximum(h2 + b[1:2, :], 0.0)
    # fc3 (no activation); lane-dense (TB, 128) store (no masked vst tail).
    q = jnp.dot(h2.astype(cdt), w_ref[2], preferred_element_type=jnp.float32)
    out_ref[...] = (q + b[2:3, :]).astype(out_ref.dtype)


def prepare_dqn_params(params, compute_dtype=jnp.bfloat16):
    """Pad all feature dims to a common 128-multiple P and pack:
      w_stack: (3, P, P) in `compute_dtype` (MXU-native),
      b_stack: (8, P) f32 (rows 0..2 = b1/b2/b3, rest zero; 8 rows keeps the
               block (8,128)-aligned).
    Do this ONCE at init.  Returns only arrays (jit-friendly)."""
    state_size, hidden = params["w1"].shape
    action_size = params["w3"].shape[1]
    P = max(_round_up(state_size, _LANE),
            _round_up(hidden, _LANE),
            _round_up(action_size, _LANE))

    w_stack = jnp.stack([
        _pad2(params["w1"], P, P),
        _pad2(params["w2"], P, P),
        _pad2(params["w3"], P, P),
    ]).astype(compute_dtype)

    b_stack = jnp.zeros((8, P), jnp.float32)
    b_stack = b_stack.at[0, :hidden].set(params["b1"].reshape(-1))
    b_stack = b_stack.at[1, :hidden].set(params["b2"].reshape(-1))
    b_stack = b_stack.at[2, :action_size].set(params["b3"].reshape(-1))
    return w_stack, b_stack


@functools.partial(jax.jit, static_argnames=("action_size", "tile_batch"))
def dqn_forward(x, w_stack, b_stack, *, action_size, tile_batch=256):
    """Forward pass. x: (batch, state_size) f32 -> (batch, action_size) f32.
    The zero-pad of x and the final slice are inside this jit so XLA fuses them
    with the pallas_call instead of issuing standalone pad/slice launches."""
    batch, state_size = x.shape
    _, P, _ = w_stack.shape

    TB = tile_batch                      # keep TB in the 256-512 range
    B = _round_up(batch, TB)
    n_blocks = B // TB

    # Zero-pad batch rows and state columns (padded rows just produce
    # ReLU(bias) chains and are sliced away below).  x stays f32; the bf16
    # cast happens inside the kernel.
    xp = jnp.zeros((B, P), jnp.float32).at[:batch, :state_size].set(x)

    # VMEM budget note (v7x has 64 MiB physical / 32 MiB scoped default):
    # at hidden=2048 the stacked weights are 3 * 8 MiB bf16 (double-buffered by
    # default); at hidden=4096 w2 alone is 32 MiB.  At that scale, tile the N
    # dim of w2/w3 with a second grid axis marked "arbitrary", single-buffer
    # the resident weights (pipeline_mode=pl.Buffered(1)), and raise
    # vmem_limit_bytes via CompilerParams.  At CartPole sizes (<1 MiB total)
    # none of this is needed.
    out = pl.pallas_call(
        _dqn_kernel,
        out_shape=jax.ShapeDtypeStruct((B, P), jnp.float32),
        grid=(n_blocks,),
        in_specs=[
            pl.BlockSpec((TB, P), lambda i: (i, 0)),       # x: tiled over batch
            pl.BlockSpec((3, P, P), lambda i: (0, 0, 0)),  # stacked weights: resident
            pl.BlockSpec((8, P), lambda i: (0, 0)),        # packed biases: resident
        ],
        out_specs=pl.BlockSpec((TB, P), lambda i: (i, 0)),  # lane-dense (TB, 128)
        compiler_params=pltpu.CompilerParams(
            # Single-step grid at this batch; use pltpu.CORE_PARALLEL here only
            # when the grid has >=2 steps of >=256 rows (v7x dual-TC).
            dimension_semantics=("arbitrary",),
        ),
    )(xp, w_stack, b_stack)

    # Slice the real Q rows/columns out of the lane-dense slab (fused by XLA).
    return out[:batch, :action_size]


def init_dqn_params(key, state_size, action_size, hidden_size):
    """Deterministic init matching PyTorch nn.Linear default
    (U[-1/sqrt(fan_in), +1/sqrt(fan_in)]); weights stored as (in, out)."""
    def linear(k, fan_in, fan_out):
        kw, kb = jax.random.split(k)
        bound = 1.0 / jnp.sqrt(jnp.float32(fan_in))
        w = jax.random.uniform(kw, (fan_in, fan_out), jnp.float32, -bound, bound)
        b = jax.random.uniform(kb, (1, fan_out), jnp.float32, -bound, bound)
        return w, b

    k1, k2, k3 = jax.random.split(key, 3)
    w1, b1 = linear(k1, state_size, hidden_size)
    w2, b2 = linear(k2, hidden_size, hidden_size)
    w3, b3 = linear(k3, hidden_size, action_size)
    return {"w1": w1, "b1": b1, "w2": w2, "b2": b2, "w3": w3, "b3": b3}


if __name__ == "__main__":
    # CartPole-like sizes: state=4, actions=2, hidden=32.
    # Batch = 256 (replay-buffer minibatch) -> a single grid step of 256 rows,
    # which amortizes launch overhead and feeds the MXU a long LHS stream.
    STATE_SIZE, ACTION_SIZE, HIDDEN_SIZE, BATCH = 4, 2, 32, 256

    key = jax.random.PRNGKey(0)
    k_params, k_x = jax.random.split(key)
    params = init_dqn_params(k_params, STATE_SIZE, ACTION_SIZE, HIDDEN_SIZE)
    w_stack, b_stack = prepare_dqn_params(params)   # pad + pack + bf16-cast once
    x = jax.random.normal(k_x, (BATCH, STATE_SIZE), jnp.float32)

    out = dqn_forward(x, w_stack, b_stack, action_size=ACTION_SIZE)
    jax.block_until_ready(out)
    assert out.shape == (BATCH, ACTION_SIZE)

    # Reference in plain JAX, mimicking the kernel's bf16 operand rounding
    # (f32 accumulation, f32 bias add) so the comparison is tight.
    f32 = lambda a: a.astype(jnp.float32)
    bf = lambda a: f32(a.astype(jnp.bfloat16))
    h1 = jnp.maximum(bf(x) @ bf(params["w1"]) + params["b1"], 0.0)
    h2 = jnp.maximum(bf(h1) @ bf(params["w2"]) + params["b2"], 0.0)
    ref = bf(h2) @ bf(params["w3"]) + params["b3"]
    assert jnp.allclose(out, ref, atol=1e-3, rtol=1e-3)

    print("KERNEL_OK")
</pallas_src>

<mosaic_0001>
module attributes {stable_mosaic.version = 11 : i64} {
  func.func @_dqn_kernel(%arg0: i32, %arg1: memref<256x128xf32, #tpu.memory_space<vmem>>, %arg2: memref<3x128x128xbf16, #tpu.memory_space<vmem>>, %arg3: memref<8x128xf32, #tpu.memory_space<vmem>>, %arg4: memref<256x128xf32, #tpu.memory_space<vmem>>) attributes {dimension_semantics = [#tpu.dimension_semantics<arbitrary>], iteration_bounds = array<i64: 1>, scalar_prefetch = 0 : i64, scratch_operands = 0 : i64, tpu.core_type = #tpu.core_type<tc>, window_params = [{transform_indices = @transform_0, window_bounds = array<i64: 256, 128>}, {pipeline_mode = #tpu.pipeline_mode<synchronous>, transform_indices = @transform_1, window_bounds = array<i64: 3, 128, 128>}, {pipeline_mode = #tpu.pipeline_mode<synchronous>, transform_indices = @transform_2, window_bounds = array<i64: 8, 128>}, {transform_indices = @transform_3, window_bounds = array<i64: 256, 128>}]} {
    %c0 = arith.constant 0 : index
    %c0_0 = arith.constant 0 : index
    %0 = vector.load %arg3[%c0, %c0_0] : memref<8x128xf32, #tpu.memory_space<vmem>>, vector<8x128xf32>
    %c0_1 = arith.constant 0 : index
    %c0_2 = arith.constant 0 : index
    %1 = vector.load %arg1[%c0_1, %c0_2] : memref<256x128xf32, #tpu.memory_space<vmem>>, vector<256x128xf32>
    %2 = arith.truncf %1 : vector<256x128xf32> to vector<256x128xbf16>
    %c0_3 = arith.constant 0 : index
    %c0_4 = arith.constant 0 : index
    %c0_5 = arith.constant 0 : index
    %3 = vector.load %arg2[%c0_3, %c0_4, %c0_5] : memref<3x128x128xbf16, #tpu.memory_space<vmem>>, vector<1x128x128xbf16>
    %4 = vector.shape_cast %3 : vector<1x128x128xbf16> to vector<128x128xbf16>
    %cst = arith.constant dense<0.000000e+00> : vector<256x128xf32>
    %5 = tpu.matmul %2, %4, %cst {dimension_numbers = #tpu.dot_dimension_numbers<[1], [0], [0], [1], [0, 0, 1, 1], [], []>} : vector<256x128xbf16>, vector<128x128xbf16>, vector<256x128xf32> -> vector<256x128xf32>
    %6 = vector.extract_strided_slice %0 {offsets = [0, 0], sizes = [1, 128], strides = [1, 1]} : vector<8x128xf32> to vector<1x128xf32>
    %7 = vector.broadcast %6 : vector<1x128xf32> to vector<256x128xf32>
    %8 = arith.addf %5, %7 : vector<256x128xf32>
    %cst_6 = arith.constant 0.000000e+00 : f32
    %9 = vector.broadcast %cst_6 : f32 to vector<256x128xf32>
    %10 = arith.maximumf %8, %9 : vector<256x128xf32>
    %11 = arith.truncf %10 : vector<256x128xf32> to vector<256x128xbf16>
    %c1 = arith.constant 1 : index
    %c0_7 = arith.constant 0 : index
    %c0_8 = arith.constant 0 : index
    %12 = vector.load %arg2[%c1, %c0_7, %c0_8] : memref<3x128x128xbf16, #tpu.memory_space<vmem>>, vector<1x128x128xbf16>
    %13 = vector.shape_cast %12 : vector<1x128x128xbf16> to vector<128x128xbf16>
    %cst_9 = arith.constant dense<0.000000e+00> : vector<256x128xf32>
    %14 = tpu.matmul %11, %13, %cst_9 {dimension_numbers = #tpu.dot_dimension_numbers<[1], [0], [0], [1], [0, 0, 1, 1], [], []>} : vector<256x128xbf16>, vector<128x128xbf16>, vector<256x128xf32> -> vector<256x128xf32>
    %15 = vector.extract_strided_slice %0 {offsets = [1, 0], sizes = [1, 128], strides = [1, 1]} : vector<8x128xf32> to vector<1x128xf32>
    %16 = vector.broadcast %15 : vector<1x128xf32> to vector<256x128xf32>
    %17 = arith.addf %14, %16 : vector<256x128xf32>
    %cst_10 = arith.constant 0.000000e+00 : f32
    %18 = vector.broadcast %cst_10 : f32 to vector<256x128xf32>
    %19 = arith.maximumf %17, %18 : vector<256x128xf32>
    %20 = arith.truncf %19 : vector<256x128xf32> to vector<256x128xbf16>
    %c2 = arith.constant 2 : index
    %c0_11 = arith.constant 0 : index
    %c0_12 = arith.constant 0 : index
    %21 = vector.load %arg2[%c2, %c0_11, %c0_12] : memref<3x128x128xbf16, #tpu.memory_space<vmem>>, vector<1x128x128xbf16>
    %22 = vector.shape_cast %21 : vector<1x128x128xbf16> to vector<128x128xbf16>
    %cst_13 = arith.constant dense<0.000000e+00> : vector<256x128xf32>
    %23 = tpu.matmul %20, %22, %cst_13 {dimension_numbers = #tpu.dot_dimension_numbers<[1], [0], [0], [1], [0, 0, 1, 1], [], []>} : vector<256x128xbf16>, vector<128x128xbf16>, vector<256x128xf32> -> vector<256x128xf32>
    %24 = vector.extract_strided_slice %0 {offsets = [2, 0], sizes = [1, 128], strides = [1, 1]} : vector<8x128xf32> to vector<1x128xf32>
    %25 = vector.broadcast %24 : vector<1x128xf32> to vector<256x128xf32>
    %26 = arith.addf %23, %25 : vector<256x128xf32>
    %c0_14 = arith.constant 0 : index
    %c0_15 = arith.constant 0 : index
    %27 = vector.load %arg4[%c0_14, %c0_15] : memref<256x128xf32, #tpu.memory_space<vmem>>, vector<256x128xf32>
    tpu.vector_store %arg4[%c0_14, %c0_15], %26 {strides = array<i32>} : memref<256x128xf32, #tpu.memory_space<vmem>>, vector<256x128xf32>,
    return
  }
  func.func @transform_0(%arg0: i32) -> (i32, i32) {
    %c0_i32 = arith.constant 0 : i32
    %c0_i32_0 = arith.constant 0 : i32
    return %arg0, %c0_i32 : i32, i32
  }
  func.func @transform_1(%arg0: i32) -> (i32, i32, i32) {
    %c0_i32 = arith.constant 0 : i32
    %c0_i32_0 = arith.constant 0 : i32
    %c0_i32_1 = arith.constant 0 : i32
    %c0_i32_2 = arith.constant 0 : i32
    return %c0_i32, %c0_i32_0, %c0_i32_1 : i32, i32, i32
  }
  func.func @transform_2(%arg0: i32) -> (i32, i32) {
    %c0_i32 = arith.constant 0 : i32
    %c0_i32_0 = arith.constant 0 : i32
    %c0_i32_1 = arith.constant 0 : i32
    return %c0_i32, %c0_i32_0 : i32, i32
  }
  func.func @transform_3(%arg0: i32) -> (i32, i32) {
    %c0_i32 = arith.constant 0 : i32
    %c0_i32_0 = arith.constant 0 : i32
    return %arg0, %c0_i32 : i32, i32
  }
}

</mosaic_0001>

<llo_original>
// kernel: dqn_forward.1
$region0: #{dqn_forward.1}
  #allocation0 [shape = 'u32[]', space=smem, size = 0x4, offset = 0x4, fixed_abs, tag = 'smem constant byte address 0x4 - core index']
  #allocation1 [shape = 'u32[144,128]{1,0:T(1,128)}', space=vmem, size = 0x12000, scoped, tag = 'internal scratch']
  %s0 = inlined_call_operand.vmem [shape: f32[256,128], index: 0, kind: input, shape index: {}]
  %s1 = inlined_call_operand.vmem [shape: bf16[3,128,128], index: 1, kind: input, shape index: {}]
  %s2 = inlined_call_operand.vmem [shape: f32[8,128], index: 2, kind: input, shape index: {}]
  %s3 = inlined_call_operand.vmem [shape: f32[256,128], index: 3, kind: output, shape index: {}]
  %s4 = sld [smem:[#allocation0]]
  $region22: #{dqn_forward.1} parent=0
    _
  %s6 = ssub.s32 1, %s4
  %s7 = scalar_select 0, %s6, %s4
  // Predicated region
  $region2: #{dqn_forward.1} parent=0 // pred_check
    _
  $region3: #{dqn_forward.1} parent=0 // pred_check_branch
    %9 = sbr.rel (0) target = $region5
  $region4: #{dqn_forward.1} parent=0 // pred_region
    _
  $region5: #{dqn_forward.1} parent=0 // pred_fallthru
    _
  // Predicated region
  $region6: #{dqn_forward.1} parent=0 // pred_check
    _
  $region7: #{dqn_forward.1} parent=0 // pred_check_branch
    %11 = sbr.rel (0) target = $region9
  $region8: #{dqn_forward.1} parent=0 // pred_region
    _
  $region9: #{dqn_forward.1} parent=0 // pred_fallthru
    _
  // Predicated region
  $region10: #{dqn_forward.1} parent=0 // pred_check
    _
  $region11: #{dqn_forward.1} parent=0 // pred_check_branch
    %13 = sbr.rel (0) target = $region13
  $region12: #{dqn_forward.1} parent=0 // pred_region
    _
  $region13: #{dqn_forward.1} parent=0 // pred_fallthru
    _
  %v15 = vld [vmem:[%s2] sm:$0xff]
  %v16 = vld [vmem:[%s0] sm:$0xff]
  %v17 = vld [vmem:[%s0 + $0x8] sm:$0xff]
  %v18 = vld [vmem:[%s0 + $0x10] sm:$0xff]
  %v19 = vld [vmem:[%s0 + $0x18] sm:$0xff]
  %v20 = vld [vmem:[%s0 + $0x20] sm:$0xff]
  %v21 = vld [vmem:[%s0 + $0x28] sm:$0xff]
  %v22 = vld [vmem:[%s0 + $0x30] sm:$0xff]
  %v23 = vld [vmem:[%s0 + $0x38] sm:$0xff]
  %v24 = vld [vmem:[%s0 + $0x40] sm:$0xff]
  %v25 = vld [vmem:[%s0 + $0x48] sm:$0xff]
  %v26 = vld [vmem:[%s0 + $0x50] sm:$0xff]
  %v27 = vld [vmem:[%s0 + $0x58] sm:$0xff]
  %v28 = vld [vmem:[%s0 + $0x60] sm:$0xff]
  %v29 = vld [vmem:[%s0 + $0x68] sm:$0xff]
  %v30 = vld [vmem:[%s0 + $0x70] sm:$0xff]
  %v31 = vld [vmem:[%s0 + $0x78] sm:$0xff]
  %v32 = vld [vmem:[%s0 + $0x80] sm:$0xff]
  %v33 = vld [vmem:[%s0 + $0x88] sm:$0xff]
  %v34 = vld [vmem:[%s0 + $0x90] sm:$0xff]
  %v35 = vld [vmem:[%s0 + $0x98] sm:$0xff]
  %v36 = vld [vmem:[%s0 + $0xa0] sm:$0xff]
  %v37 = vld [vmem:[%s0 + $0xa8] sm:$0xff]
  %v38 = vld [vmem:[%s0 + $0xb0] sm:$0xff]
  %v39 = vld [vmem:[%s0 + $0xb8] sm:$0xff]
  %v40 = vld [vmem:[%s0 + $0xc0] sm:$0xff]
  %v41 = vld [vmem:[%s0 + $0xc8] sm:$0xff]
  %v42 = vld [vmem:[%s0 + $0xd0] sm:$0xff]
  %v43 = vld [vmem:[%s0 + $0xd8] sm:$0xff]
  %v44 = vld [vmem:[%s0 + $0xe0] sm:$0xff]
  %v45 = vld [vmem:[%s0 + $0xe8] sm:$0xff]
  %v46 = vld [vmem:[%s0 + $0xf0] sm:$0xff]
  %v47 = vld [vmem:[%s0 + $0xf8] sm:$0xff]
  %v48 = vpack.c.bf16 %v17, %v16
  %v49 = vpack.c.bf16 %v19, %v18
  %v50 = vpack.c.bf16 %v21, %v20
  %v51 = vpack.c.bf16 %v23, %v22
  %v52 = vpack.c.bf16 %v25, %v24
  %v53 = vpack.c.bf16 %v27, %v26
  %v54 = vpack.c.bf16 %v29, %v28
  %v55 = vpack.c.bf16 %v31, %v30
  %v56 = vpack.c.bf16 %v33, %v32
  %v57 = vpack.c.bf16 %v35, %v34
  %v58 = vpack.c.bf16 %v37, %v36
  %v59 = vpack.c.bf16 %v39, %v38
  %v60 = vpack.c.bf16 %v41, %v40
  %v61 = vpack.c.bf16 %v43, %v42
  %v62 = vpack.c.bf16 %v45, %v44
  %v63 = vpack.c.bf16 %v47, %v46
  %v64 = vld [vmem:[%s1] sm:$0xf]
  %v65 = vld [vmem:[%s1 + $0x4] sm:$0xf]
  %v66 = vld [vmem:[%s1 + $0x8] sm:$0xf]
  %v67 = vld [vmem:[%s1 + $0xc] sm:$0xf]
  %v68 = vld [vmem:[%s1 + $0x10] sm:$0xf]
  %v69 = vld [vmem:[%s1 + $0x14] sm:$0xf]
  %v70 = vld [vmem:[%s1 + $0x18] sm:$0xf]
  %v71 = vld [vmem:[%s1 + $0x1c] sm:$0xf]
  %v72 = vld [vmem:[%s1 + $0x20] sm:$0xf]
  %v73 = vld [vmem:[%s1 + $0x24] sm:$0xf]
  %v74 = vld [vmem:[%s1 + $0x28] sm:$0xf]
  %v75 = vld [vmem:[%s1 + $0x2c] sm:$0xf]
  %v76 = vld [vmem:[%s1 + $0x30] sm:$0xf]
  %v77 = vld [vmem:[%s1 + $0x34] sm:$0xf]
  %v78 = vld [vmem:[%s1 + $0x38] sm:$0xf]
  %v79 = vld [vmem:[%s1 + $0x3c] sm:$0xf]
  %v80 = vlaneseq
  %v81 = vshrl.u32 %v80, 7
  %v82 = vsub.s32 0, %v81
  %v83 = vrot.slane %v15, %v82
  %v100 = vunpack.c.l.b16 %v64
  %v101 = vunpack.c.l.b16 %v65
  %v102 = vunpack.c.l.b16 %v66
  %v103 = vunpack.c.l.b16 %v67
  %v104 = vunpack.c.l.b16 %v68
  %v105 = vunpack.c.l.b16 %v69
  %v106 = vunpack.c.l.b16 %v70
  %v107 = vunpack.c.l.b16 %v71
  %v108 = vunpack.c.l.b16 %v72
  %v109 = vunpack.c.l.b16 %v73
  %v110 = vunpack.c.l.b16 %v74
  %v111 = vunpack.c.l.b16 %v75
  %v112 = vunpack.c.l.b16 %v76
  %v113 = vunpack.c.l.b16 %v77
  %v114 = vunpack.c.l.b16 %v78
  %v115 = vunpack.c.l.b16 %v79
  %v116 = vpack.c.b16 %v101, %v100
  %v117 = vpack.c.b16 %v103, %v102
  %v118 = vpack.c.b16 %v105, %v104
  %v119 = vpack.c.b16 %v107, %v106
  %v120 = vpack.c.b16 %v109, %v108
  %v121 = vpack.c.b16 %v111, %v110
  %v122 = vpack.c.b16 %v113, %v112
  %v123 = vpack.c.b16 %v115, %v114
  %132 = vmatprep.subr.bf16.mxu0 0
  %133 = vmatpush1.bf16.msra.mxu0 %v116
  %134 = vmatprep.subr.bf16.mxu0 0
  %135 = vmatpush1.bf16.msra.mxu0 %v117
  %136 = vmatprep.subr.bf16.mxu0 0
  %137 = vmatpush1.bf16.msra.mxu0 %v118
  %138 = vmatprep.subr.bf16.mxu0 0
  %139 = vmatpush1.bf16.msra.mxu0 %v119
  %140 = vmatprep.subr.bf16.mxu0 0
  %141 = vmatpush1.bf16.msra.mxu0 %v120
  %142 = vmatprep.subr.bf16.mxu0 0
  %143 = vmatpush1.bf16.msra.mxu0 %v121
  %144 = vmatprep.subr.bf16.mxu0 0
  %145 = vmatpush1.bf16.msra.mxu0 %v122
  %146 = vmatprep.subr.bf16.mxu0 0
  %147 = vmatpush1.bf16.msra.mxu0 %v123
  %148 = vmatprep.subr.bf16.mxu0 0
  %149 = vmatpush1.bf16.msra.mxu0 0
  %150 = vmatprep.subr.bf16.mxu0 0
  %151 = vmatpush1.bf16.msra.mxu0 0
  %152 = vmatprep.subr.bf16.mxu0 0
  %153 = vmatpush1.bf16.msra.mxu0 0
  %154 = vmatprep.subr.bf16.mxu0 0
  %155 = vmatpush1.bf16.msra.mxu0 0
  %156 = vmatprep.subr.bf16.mxu0 0
  %157 = vmatpush1.bf16.msra.mxu0 0
  %158 = vmatprep.subr.bf16.mxu0 0
  %159 = vmatpush1.bf16.msra.mxu0 0
  %160 = vmatprep.subr.bf16.mxu0 0
  %161 = vmatpush1.bf16.msra.mxu0 0
  %162 = vmatprep.subr.bf16.mxu0 0
  %163 = vmatpush1.bf16.msra.mxu0 0
  %164 = vmatprep.mubr.bf16.mxu0 0
  %165 = vmatmul.mubr.bf16.gmra.mrb[0].mxu0 %v48
  %v166 = vpop.f32.mrb[0].mxu0
  %v167 = vadd.f32 %v83, %v166
  %v168 = vpop.f32.mrb[0].mxu0
  %v169 = vpop.f32.mrb[0].mxu0
  %v170 = vadd.f32 %v83, %v169
  %v171 = vpop.f32.mrb[0].mxu0
  %172 = vmatprep.mubr.bf16.mxu0 0
  %173 = vmatmul.mubr.bf16.gmra.mrb[0].mxu0 %v49
  %v174 = vpop.f32.mrb[0].mxu0
  %v175 = vadd.f32 %v83, %v174
  %v176 = vpop.f32.mrb[0].mxu0
  %v177 = vpop.f32.mrb[0].mxu0
  %v178 = vadd.f32 %v83, %v177
  %v179 = vpop.f32.mrb[0].mxu0
  %180 = vmatprep.mubr.bf16.mxu0 0
  %181 = vmatmul.mubr.bf16.gmra.mrb[0].mxu0 %v50
  %v182 = vpop.f32.mrb[0].mxu0
  %v183 = vadd.f32 %v83, %v182
  %v184 = vpop.f32.mrb[0].mxu0
  %v185 = vpop.f32.mrb[0].mxu0
  %v186 = vadd.f32 %v83, %v185
  %v187 = vpop.f32.mrb[0].mxu0
  %188 = vmatprep.mubr.bf16.mxu0 0
  %189 = vmatmul.mubr.bf16.gmra.mrb[0].mxu0 %v51
  %v190 = vpop.f32.mrb[0].mxu0
  %v191 = vadd.f32 %v83, %v190
  %v192 = vpop.f32.mrb[0].mxu0
  %v193 = vpop.f32.mrb[0].mxu0
  %v194 = vadd.f32 %v83, %v193
  %v195 = vpop.f32.mrb[0].mxu0
  %196 = vmatprep.mubr.bf16.mxu0 0
  %197 = vmatmul.mubr.bf16.gmra.mrb[0].mxu0 %v52
  %v198 = vpop.f32.mrb[0].mxu0
  %v199 = vadd.f32 %v83, %v198
  %v200 = vpop.f32.mrb[0].mxu0
  %v201 = vpop.f32.mrb[0].mxu0
  %v202 = vadd.f32 %v83, %v201
  %v203 = vpop.f32.mrb[0].mxu0
  %204 = vmatprep.mubr.bf16.mxu0 0
  %205 = vmatmul.mubr.bf16.gmra.mrb[0].mxu0 %v53
  %v206 = vpop.f32.mrb[0].mxu0
  %v207 = vadd.f32 %v83, %v206
  %v208 = vpop.f32.mrb[0].mxu0
  %v209 = vpop.f32.mrb[0].mxu0
  %v210 = vadd.f32 %v83, %v209
  %v211 = vpop.f32.mrb[0].mxu0
  %212 = vmatprep.mubr.bf16.mxu0 0
  %213 = vmatmul.mubr.bf16.gmra.mrb[0].mxu0 %v54
  %v214 = vpop.f32.mrb[0].mxu0
  %v215 = vadd.f32 %v83, %v214
  %v216 = vpop.f32.mrb[0].mxu0
  %v217 = vpop.f32.mrb[0].mxu0
  %v218 = vadd.f32 %v83, %v217
  %v219 = vpop.f32.mrb[0].mxu0
  %220 = vmatprep.mubr.bf16.mxu0 0
  %221 = vmatmul.mubr.bf16.gmra.mrb[0].mxu0 %v55
  %v222 = vpop.f32.mrb[0].mxu0
  %v223 = vadd.f32 %v83, %v222
  %v224 = vpop.f32.mrb[0].mxu0
  %v225 = vpop.f32.mrb[0].mxu0
  %v226 = vadd.f32 %v83, %v225
  %v227 = vpop.f32.mrb[0].mxu0
  %228 = vmatprep.mubr.bf16.mxu0 0
  %229 = vmatmul.mubr.bf16.gmra.mrb[0].mxu0 %v56
  %v230 = vpop.f32.mrb[0].mxu0
  %v231 = vadd.f32 %v83, %v230
  %v232 = vpop.f32.mrb[0].mxu0
  %v233 = vpop.f32.mrb[0].mxu0
  %v234 = vadd.f32 %v83, %v233
  %v235 = vpop.f32.mrb[0].mxu0
  %236 = vmatprep.mubr.bf16.mxu0 0
  %237 = vmatmul.mubr.bf16.gmra.mrb[0].mxu0 %v57
  %v238 = vpop.f32.mrb[0].mxu0
  %v239 = vadd.f32 %v83, %v238
  %v240 = vpop.f32.mrb[0].mxu0
  %v241 = vpop.f32.mrb[0].mxu0
  %v242 = vadd.f32 %v83, %v241
  %v243 = vpop.f32.mrb[0].mxu0
  %244 = vmatprep.mubr.bf16.mxu0 0
  %245 = vmatmul.mubr.bf16.gmra.mrb[0].mxu0 %v58
  %v246 = vpop.f32.mrb[0].mxu0
  %v247 = vadd.f32 %v83, %v246
  %v248 = vpop.f32.mrb[0].mxu0
  %v249 = vpop.f32.mrb[0].mxu0
  %v250 = vadd.f32 %v83, %v249
  %v251 = vpop.f32.mrb[0].mxu0
  %252 = vmatprep.mubr.bf16.mxu0 0
  %253 = vmatmul.mubr.bf16.gmra.mrb[0].mxu0 %v59
  %v254 = vpop.f32.mrb[0].mxu0
  %v255 = vadd.f32 %v83, %v254
  %v256 = vpop.f32.mrb[0].mxu0
  %v257 = vpop.f32.mrb[0].mxu0
  %v258 = vadd.f32 %v83, %v257
  %v259 = vpop.f32.mrb[0].mxu0
  %260 = vmatprep.mubr.bf16.mxu0 0
  %261 = vmatmul.mubr.bf16.gmra.mrb[0].mxu0 %v60
  %v262 = vpop.f32.mrb[0].mxu0
  %v263 = vadd.f32 %v83, %v262
  %v264 = vpop.f32.mrb[0].mxu0
  %v265 = vpop.f32.mrb[0].mxu0
  %v266 = vadd.f32 %v83, %v265
  %v267 = vpop.f32.mrb[0].mxu0
  %268 = vmatprep.mubr.bf16.mxu0 0
  %269 = vmatmul.mubr.bf16.gmra.mrb[0].mxu0 %v61
  %v270 = vpop.f32.mrb[0].mxu0
  %v271 = vadd.f32 %v83, %v270
  %v272 = vpop.f32.mrb[0].mxu0
  %v273 = vpop.f32.mrb[0].mxu0
  %v274 = vadd.f32 %v83, %v273
  %v275 = vpop.f32.mrb[0].mxu0
  %276 = vmatprep.mubr.bf16.mxu0 0
  %277 = vmatmul.mubr.bf16.gmra.mrb[0].mxu0 %v62
  %v278 = vpop.f32.mrb[0].mxu0
  %v279 = vadd.f32 %v83, %v278
  %v280 = vpop.f32.mrb[0].mxu0
  %v281 = vpop.f32.mrb[0].mxu0
  %v282 = vadd.f32 %v83, %v281
  %v283 = vpop.f32.mrb[0].mxu0
  %284 = vmatprep.mubr.bf16.mxu0 0
  %285 = vmatmul.mubr.bf16.gmra.mrb[0].mxu0 %v63
  %v286 = vpop.f32.mrb[0].mxu0
  %v287 = vadd.f32 %v83, %v286
  %v288 = vpop.f32.mrb[0].mxu0
  %v289 = vpop.f32.mrb[0].mxu0
  %v290 = vadd.f32 %v83, %v289
  %v291 = vpop.f32.mrb[0].mxu0
  %292 = vdwg.mxu0
  %v293 = vmax.f32 %v167, 0.0
  %v294 = vmax.f32 %v170, 0.0
  %v295 = vmax.f32 %v175, 0.0
  %v296 = vmax.f32 %v178, 0.0
  %v297 = vmax.f32 %v183, 0.0
  %v298 = vmax.f32 %v186, 0.0
  %v299 = vmax.f32 %v191, 0.0
  %v300 = vmax.f32 %v194, 0.0
  %v301 = vmax.f32 %v199, 0.0
  %v302 = vmax.f32 %v202, 0.0
  %v303 = vmax.f32 %v207, 0.0
  %v304 = vmax.f32 %v210, 0.0
  %v305 = vmax.f32 %v215, 0.0
  %v306 = vmax.f32 %v218, 0.0
  %v307 = vmax.f32 %v223, 0.0
  %v308 = vmax.f32 %v226, 0.0
  %v309 = vmax.f32 %v231, 0.0
  %v310 = vmax.f32 %v234, 0.0
  %v311 = vmax.f32 %v239, 0.0
  %v312 = vmax.f32 %v242, 0.0
  %v313 = vmax.f32 %v247, 0.0
  %v314 = vmax.f32 %v250, 0.0
  %v315 = vmax.f32 %v255, 0.0
  %v316 = vmax.f32 %v258, 0.0
  %v317 = vmax.f32 %v263, 0.0
  %v318 = vmax.f32 %v266, 0.0
  %v319 = vmax.f32 %v271, 0.0
  %v320 = vmax.f32 %v274, 0.0
  %v321 = vmax.f32 %v279, 0.0
  %v322 = vmax.f32 %v282, 0.0
  %v323 = vmax.f32 %v287, 0.0
  %v324 = vmax.f32 %v290, 0.0
  %v325 = vpack.c.bf16 %v294, %v293
  %v326 = vpack.c.bf16 %v296, %v295
  %v327 = vpack.c.bf16 %v298, %v297
  %v328 = vpack.c.bf16 %v300, %v299
  %v329 = vpack.c.bf16 %v302, %v301
  %v330 = vpack.c.bf16 %v304, %v303
  %v331 = vpack.c.bf16 %v306, %v305
  %v332 = vpack.c.bf16 %v308, %v307
  %v333 = vpack.c.bf16 %v310, %v309
  %v334 = vpack.c.bf16 %v312, %v311
  %v335 = vpack.c.bf16 %v314, %v313
  %v336 = vpack.c.bf16 %v316, %v315
  %v337 = vpack.c.bf16 %v318, %v317
  %v338 = vpack.c.bf16 %v320, %v319
  %v339 = vpack.c.bf16 %v322, %v321
  %v340 = vpack.c.bf16 %v324, %v323
  %s341 = scalar_lea.vmem %s1, 64
  %v342 = vld [vmem:[%s341] sm:$0xf]
  %v343 = vld [vmem:[%s341 + $0x4] sm:$0xf]
  %v344 = vld [vmem:[%s341 + $0x8] sm:$0xf]
  %v345 = vld [vmem:[%s341 + $0xc] sm:$0xf]
  %v346 = vld [vmem:[%s341 + $0x10] sm:$0xf]
  %v347 = vld [vmem:[%s341 + $0x14] sm:$0xf]
  %v348 = vld [vmem:[%s341 + $0x18] sm:$0xf]
  %v349 = vld [vmem:[%s341 + $0x1c] sm:$0xf]
  %v350 = vld [vmem:[%s341 + $0x20] sm:$0xf]
  %v351 = vld [vmem:[%s341 + $0x24] sm:$0xf]
  %v352 = vld [vmem:[%s341 + $0x28] sm:$0xf]
  %v353 = vld [vmem:[%s341 + $0x2c] sm:$0xf]
  %v354 = vld [vmem:[%s341 + $0x30] sm:$0xf]
  %v355 = vld [vmem:[%s341 + $0x34] sm:$0xf]
  %v356 = vld [vmem:[%s341 + $0x38] sm:$0xf]
  %v357 = vld [vmem:[%s341 + $0x3c] sm:$0xf]
  %v358 = vlaneseq
  %v359 = vshrl.u32 %v358, 7
  %v360 = vsub.s32 1, %v359
  %v361 = vrot.slane %v15, %v360
  %v378 = vunpack.c.l.b16 %v342
  %v379 = vunpack.c.l.b16 %v343
  %v380 = vunpack.c.l.b16 %v344
  %v381 = vunpack.c.l.b16 %v345
  %v382 = vunpack.c.l.b16 %v346
  %v383 = vunpack.c.l.b16 %v347
  %v384 = vunpack.c.l.b16 %v348
  %v385 = vunpack.c.l.b16 %v349
  %v386 = vunpack.c.l.b16 %v350
  %v387 = vunpack.c.l.b16 %v351
  %v388 = vunpack.c.l.b16 %v352
  %v389 = vunpack.c.l.b16 %v353
  %v390 = vunpack.c.l.b16 %v354
  %v391 = vunpack.c.l.b16 %v355
  %v392 = vunpack.c.l.b16 %v356
  %v393 = vunpack.c.l.b16 %v357
  %v394 = vpack.c.b16 %v379, %v378
  %v395 = vpack.c.b16 %v381, %v380
  %v396 = vpack.c.b16 %v383, %v382
  %v397 = vpack.c.b16 %v385, %v384
  %v398 = vpack.c.b16 %v387, %v386
  %v399 = vpack.c.b16 %v389, %v388
  %v400 = vpack.c.b16 %v391, %v390
  %v401 = vpack.c.b16 %v393, %v392
  %410 = vmatprep.subr.bf16.mxu0 0
  %411 = vmatpush1.bf16.msra.mxu0 %v394
  %412 = vmatprep.subr.bf16.mxu0 0
  %413 = vmatpush1.bf16.msra.mxu0 %v395
  %414 = vmatprep.subr.bf16.mxu0 0
  %415 = vmatpush1.bf16.msra.mxu0 %v396
  %416 = vmatprep.subr.bf16.mxu0 0
  %417 = vmatpush1.bf16.msra.mxu0 %v397
  %418 = vmatprep.subr.bf16.mxu0 0
  %419 = vmatpush1.bf16.msra.mxu0 %v398
  %420 = vmatprep.subr.bf16.mxu0 0
  %421 = vmatpush1.bf16.msra.mxu0 %v399
  %422 = vmatprep.subr.bf16.mxu0 0
  %423 = vmatpush1.bf16.msra.mxu0 %v400
  %424 = vmatprep.subr.bf16.mxu0 0
  %425 = vmatpush1.bf16.msra.mxu0 %v401
  %426 = vmatprep.subr.bf16.mxu0 0
  %427 = vmatpush1.bf16.msra.mxu0 0
  %428 = vmatprep.subr.bf16.mxu0 0
  %429 = vmatpush1.bf16.msra.mxu0 0
  %430 = vmatprep.subr.bf16.mxu0 0
  %431 = vmatpush1.bf16.msra.mxu0 0
  %432 = vmatprep.subr.bf16.mxu0 0
  %433 = vmatpush1.bf16.msra.mxu0 0
  %434 = vmatprep.subr.bf16.mxu0 0
  %435 = vmatpush1.bf16.msra.mxu0 0
  %436 = vmatprep.subr.bf16.mxu0 0
  %437 = vmatpush1.bf16.msra.mxu0 0
  %438 = vmatprep.subr.bf16.mxu0 0
  %439 = vmatpush1.bf16.msra.mxu0 0
  %440 = vmatprep.subr.bf16.mxu0 0
  %441 = vmatpush1.bf16.msra.mxu0 0
  %442 = vmatprep.mubr.bf16.mxu0 0
  %443 = vmatmul.mubr.bf16.gmra.mrb[0].mxu0 %v325
  %v444 = vpop.f32.mrb[0].mxu0
  %v445 = vadd.f32 %v361, %v444
  %v446 = vpop.f32.mrb[0].mxu0
  %v447 = vpop.f32.mrb[0].mxu0
  %v448 = vadd.f32 %v361, %v447
  %v449 = vpop.f32.mrb[0].mxu0
  %450 = vmatprep.mubr.bf16.mxu0 0
  %451 = vmatmul.mubr.bf16.gmra.mrb[0].mxu0 %v326
  %v452 = vpop.f32.mrb[0].mxu0
  %v453 = vadd.f32 %v361, %v452
  %v454 = vpop.f32.mrb[0].mxu0
  %v455 = vpop.f32.mrb[0].mxu0
  %v456 = vadd.f32 %v361, %v455
  %v457 = vpop.f32.mrb[0].mxu0
  %458 = vmatprep.mubr.bf16.mxu0 0
  %459 = vmatmul.mubr.bf16.gmra.mrb[0].mxu0 %v327
  %v460 = vpop.f32.mrb[0].mxu0
  %v461 = vadd.f32 %v361, %v460
  %v462 = vpop.f32.mrb[0].mxu0
  %v463 = vpop.f32.mrb[0].mxu0
  %v464 = vadd.f32 %v361, %v463
  %v465 = vpop.f32.mrb[0].mxu0
  %466 = vmatprep.mubr.bf16.mxu0 0
  %467 = vmatmul.mubr.bf16.gmra.mrb[0].mxu0 %v328
  %v468 = vpop.f32.mrb[0].mxu0
  %v469 = vadd.f32 %v361, %v468
  %v470 = vpop.f32.mrb[0].mxu0
  %v471 = vpop.f32.mrb[0].mxu0
  %v472 = vadd.f32 %v361, %v471
  %v473 = vpop.f32.mrb[0].mxu0
  %474 = vmatprep.mubr.bf16.mxu0 0
  %475 = vmatmul.mubr.bf16.gmra.mrb[0].mxu0 %v329
  %v476 = vpop.f32.mrb[0].mxu0
  %v477 = vadd.f32 %v361, %v476
  %v478 = vpop.f32.mrb[0].mxu0
  %v479 = vpop.f32.mrb[0].mxu0
  %v480 = vadd.f32 %v361, %v479
  %v481 = vpop.f32.mrb[0].mxu0
  %482 = vmatprep.mubr.bf16.mxu0 0
  %483 = vmatmul.mubr.bf16.gmra.mrb[0].mxu0 %v330
  %v484 = vpop.f32.mrb[0].mxu0
  %v485 = vadd.f32 %v361, %v484
  %v486 = vpop.f32.mrb[0].mxu0
  %v487 = vpop.f32.mrb[0].mxu0
  %v488 = vadd.f32 %v361, %v487
  %v489 = vpop.f32.mrb[0].mxu0
  %490 = vmatprep.mubr.bf16.mxu0 0
  %491 = vmatmul.mubr.bf16.gmra.mrb[0].mxu0 %v331
  %v492 = vpop.f32.mrb[0].mxu0
  %v493 = vadd.f32 %v361, %v492
  %v494 = vpop.f32.mrb[0].mxu0
  %v495 = vpop.f32.mrb[0].mxu0
  %v496 = vadd.f32 %v361, %v495
  %v497 = vpop.f32.mrb[0].mxu0
  %498 = vmatprep.mubr.bf16.mxu0 0
  %499 = vmatmul.mubr.bf16.gmra.mrb[0].mxu0 %v332
  %v500 = vpop.f32.mrb[0].mxu0
  %v501 = vadd.f32 %v361, %v500
  %v502 = vpop.f32.mrb[0].mxu0
  %v503 = vpop.f32.mrb[0].mxu0
  %v504 = vadd.f32 %v361, %v503
  %v505 = vpop.f32.mrb[0].mxu0
  %506 = vmatprep.mubr.bf16.mxu0 0
  %507 = vmatmul.mubr.bf16.gmra.mrb[0].mxu0 %v333
  %v508 = vpop.f32.mrb[0].mxu0
  %v509 = vadd.f32 %v361, %v508
  %v510 = vpop.f32.mrb[0].mxu0
  %v511 = vpop.f32.mrb[0].mxu0
  %v512 = vadd.f32 %v361, %v511
  %v513 = vpop.f32.mrb[0].mxu0
  %514 = vmatprep.mubr.bf16.mxu0 0
  %515 = vmatmul.mubr.bf16.gmra.mrb[0].mxu0 %v334
  %v516 = vpop.f32.mrb[0].mxu0
  %v517 = vadd.f32 %v361, %v516
  %v518 = vpop.f32.mrb[0].mxu0
  %v519 = vpop.f32.mrb[0].mxu0
  %v520 = vadd.f32 %v361, %v519
  %v521 = vpop.f32.mrb[0].mxu0
  %522 = vmatprep.mubr.bf16.mxu0 0
  %523 = vmatmul.mubr.bf16.gmra.mrb[0].mxu0 %v335
  %v524 = vpop.f32.mrb[0].mxu0
  %v525 = vadd.f32 %v361, %v524
  %v526 = vpop.f32.mrb[0].mxu0
  %v527 = vpop.f32.mrb[0].mxu0
  %v528 = vadd.f32 %v361, %v527
  %v529 = vpop.f32.mrb[0].mxu0
  %530 = vmatprep.mubr.bf16.mxu0 0
  %531 = vmatmul.mubr.bf16.gmra.mrb[0].mxu0 %v336
  %v532 = vpop.f32.mrb[0].mxu0
  %v533 = vadd.f32 %v361, %v532
  %v534 = vpop.f32.mrb[0].mxu0
  %v535 = vpop.f32.mrb[0].mxu0
  %v536 = vadd.f32 %v361, %v535
  %v537 = vpop.f32.mrb[0].mxu0
  %538 = vmatprep.mubr.bf16.mxu0 0
  %539 = vmatmul.mubr.bf16.gmra.mrb[0].mxu0 %v337
  %v540 = vpop.f32.mrb[0].mxu0
  %v541 = vadd.f32 %v361, %v540
  %v542 = vpop.f32.mrb[0].mxu0
  %v543 = vpop.f32.mrb[0].mxu0
  %v544 = vadd.f32 %v361, %v543
  %v545 = vpop.f32.mrb[0].mxu0
  %546 = vmatprep.mubr.bf16.mxu0 0
  %547 = vmatmul.mubr.bf16.gmra.mrb[0].mxu0 %v338
  %v548 = vpop.f32.mrb[0].mxu0
  %v549 = vadd.f32 %v361, %v548
  %v550 = vpop.f32.mrb[0].mxu0
  %v551 = vpop.f32.mrb[0].mxu0
  %v552 = vadd.f32 %v361, %v551
  %v553 = vpop.f32.mrb[0].mxu0
  %554 = vmatprep.mubr.bf16.mxu0 0
  %555 = vmatmul.mubr.bf16.gmra.mrb[0].mxu0 %v339
  %v556 = vpop.f32.mrb[0].mxu0
  %v557 = vadd.f32 %v361, %v556
  %v558 = vpop.f32.mrb[0].mxu0
  %v559 = vpop.f32.mrb[0].mxu0
  %v560 = vadd.f32 %v361, %v559
  %v561 = vpop.f32.mrb[0].mxu0
  %562 = vmatprep.mubr.bf16.mxu0 0
  %563 = vmatmul.mubr.bf16.gmra.mrb[0].mxu0 %v340
  %v564 = vpop.f32.mrb[0].mxu0
  %v565 = vadd.f32 %v361, %v564
  %v566 = vpop.f32.mrb[0].mxu0
  %v567 = vpop.f32.mrb[0].mxu0
  %v568 = vadd.f32 %v361, %v567
  %v569 = vpop.f32.mrb[0].mxu0
  %570 = vdwg.mxu0
  %v571 = vmax.f32 %v445, 0.0
  %v572 = vmax.f32 %v448, 0.0
  %v573 = vmax.f32 %v453, 0.0
  %v574 = vmax.f32 %v456, 0.0
  %v575 = vmax.f32 %v461, 0.0
  %v576 = vmax.f32 %v464, 0.0
  %v577 = vmax.f32 %v469, 0.0
  %v578 = vmax.f32 %v472, 0.0
  %v579 = vmax.f32 %v477, 0.0
  %v580 = vmax.f32 %v480, 0.0
  %v581 = vmax.f32 %v485, 0.0
  %v582 = vmax.f32 %v488, 0.0
  %v583 = vmax.f32 %v493, 0.0
  %v584 = vmax.f32 %v496, 0.0
  %v585 = vmax.f32 %v501, 0.0
  %v586 = vmax.f32 %v504, 0.0
  %v587 = vmax.f32 %v509, 0.0
  %v588 = vmax.f32 %v512, 0.0
  %v589 = vmax.f32 %v517, 0.0
  %v590 = vmax.f32 %v520, 0.0
  %v591 = vmax.f32 %v525, 0.0
  %v592 = vmax.f32 %v528, 0.0
  %v593 = vmax.f32 %v533, 0.0
  %v594 = vmax.f32 %v536, 0.0
  %v595 = vmax.f32 %v541, 0.0
  %v596 = vmax.f32 %v544, 0.0
  %v597 = vmax.f32 %v549, 0.0
  %v598 = vmax.f32 %v552, 0.0
  %v599 = vmax.f32 %v557, 0.0
  %v600 = vmax.f32 %v560, 0.0
  %v601 = vmax.f32 %v565, 0.0
  %v602 = vmax.f32 %v568, 0.0
  %v603 = vpack.c.bf16 %v572, %v571
  %v604 = vpack.c.bf16 %v574, %v573
  %v605 = vpack.c.bf16 %v576, %v575
  %v606 = vpack.c.bf16 %v578, %v577
  %v607 = vpack.c.bf16 %v580, %v579
  %v608 = vpack.c.bf16 %v582, %v581
  %v609 = vpack.c.bf16 %v584, %v583
  %v610 = vpack.c.bf16 %v586, %v585
  %v611 = vpack.c.bf16 %v588, %v587
  %v612 = vpack.c.bf16 %v590, %v589
  %v613 = vpack.c.bf16 %v592, %v591
  %v614 = vpack.c.bf16 %v594, %v593
  %v615 = vpack.c.bf16 %v596, %v595
  %v616 = vpack.c.bf16 %v598, %v597
  %v617 = vpack.c.bf16 %v600, %v599
  %v618 = vpack.c.bf16 %v602, %v601
  %s619 = scalar_lea.vmem %s1, 128
  %v620 = vld [vmem:[%s619] sm:$0xf]
  %v621 = vld [vmem:[%s619 + $0x4] sm:$0xf]
  %v622 = vld [vmem:[%s619 + $0x8] sm:$0xf]
  %v623 = vld [vmem:[%s619 + $0xc] sm:$0xf]
  %v624 = vld [vmem:[%s619 + $0x10] sm:$0xf]
  %v625 = vld [vmem:[%s619 + $0x14] sm:$0xf]
  %v626 = vld [vmem:[%s619 + $0x18] sm:$0xf]
  %v627 = vld [vmem:[%s619 + $0x1c] sm:$0xf]
  %v628 = vld [vmem:[%s619 + $0x20] sm:$0xf]
  %v629 = vld [vmem:[%s619 + $0x24] sm:$0xf]
  %v630 = vld [vmem:[%s619 + $0x28] sm:$0xf]
  %v631 = vld [vmem:[%s619 + $0x2c] sm:$0xf]
  %v632 = vld [vmem:[%s619 + $0x30] sm:$0xf]
  %v633 = vld [vmem:[%s619 + $0x34] sm:$0xf]
  %v634 = vld [vmem:[%s619 + $0x38] sm:$0xf]
  %v635 = vld [vmem:[%s619 + $0x3c] sm:$0xf]
  %v636 = vlaneseq
  %v637 = vshrl.u32 %v636, 7
  %v638 = vsub.s32 2, %v637
  %v639 = vrot.slane %v15, %v638
  %v656 = vunpack.c.l.b16 %v620
  %v657 = vunpack.c.l.b16 %v621
  %v658 = vunpack.c.l.b16 %v622
  %v659 = vunpack.c.l.b16 %v623
  %v660 = vunpack.c.l.b16 %v624
  %v661 = vunpack.c.l.b16 %v625
  %v662 = vunpack.c.l.b16 %v626
  %v663 = vunpack.c.l.b16 %v627
  %v664 = vunpack.c.l.b16 %v628
  %v665 = vunpack.c.l.b16 %v629
  %v666 = vunpack.c.l.b16 %v630
  %v667 = vunpack.c.l.b16 %v631
  %v668 = vunpack.c.l.b16 %v632
  %v669 = vunpack.c.l.b16 %v633
  %v670 = vunpack.c.l.b16 %v634
  %v671 = vunpack.c.l.b16 %v635
  %v672 = vpack.c.b16 %v657, %v656
  %v673 = vpack.c.b16 %v659, %v658
  %v674 = vpack.c.b16 %v661, %v660
  %v675 = vpack.c.b16 %v663, %v662
  %v676 = vpack.c.b16 %v665, %v664
  %v677 = vpack.c.b16 %v667, %v666
  %v678 = vpack.c.b16 %v669, %v668
  %v679 = vpack.c.b16 %v671, %v670
  %688 = vmatprep.subr.bf16.mxu0 0
  %689 = vmatpush1.bf16.msra.mxu0 %v672
  %690 = vmatprep.subr.bf16.mxu0 0
  %691 = vmatpush1.bf16.msra.mxu0 %v673
  %692 = vmatprep.subr.bf16.mxu0 0
  %693 = vmatpush1.bf16.msra.mxu0 %v674
  %694 = vmatprep.subr.bf16.mxu0 0
  %695 = vmatpush1.bf16.msra.mxu0 %v675
  %696 = vmatprep.subr.bf16.mxu0 0
  %697 = vmatpush1.bf16.msra.mxu0 %v676
  %698 = vmatprep.subr.bf16.mxu0 0
  %699 = vmatpush1.bf16.msra.mxu0 %v677
  %700 = vmatprep.subr.bf16.mxu0 0
  %701 = vmatpush1.bf16.msra.mxu0 %v678
  %702 = vmatprep.subr.bf16.mxu0 0
  %703 = vmatpush1.bf16.msra.mxu0 %v679
  %704 = vmatprep.subr.bf16.mxu0 0
  %705 = vmatpush1.bf16.msra.mxu0 0
  %706 = vmatprep.subr.bf16.mxu0 0
  %707 = vmatpush1.bf16.msra.mxu0 0
  %708 = vmatprep.subr.bf16.mxu0 0
  %709 = vmatpush1.bf16.msra.mxu0 0
  %710 = vmatprep.subr.bf16.mxu0 0
  %711 = vmatpush1.bf16.msra.mxu0 0
  %712 = vmatprep.subr.bf16.mxu0 0
  %713 = vmatpush1.bf16.msra.mxu0 0
  %714 = vmatprep.subr.bf16.mxu0 0
  %715 = vmatpush1.bf16.msra.mxu0 0
  %716 = vmatprep.subr.bf16.mxu0 0
  %717 = vmatpush1.bf16.msra.mxu0 0
  %718 = vmatprep.subr.bf16.mxu0 0
  %719 = vmatpush1.bf16.msra.mxu0 0
  %720 = vmatprep.mubr.bf16.mxu0 0
  %721 = vmatmul.mubr.bf16.gmra.mrb[0].mxu0 %v603
  %v722 = vpop.f32.mrb[0].mxu0
  %v723 = vadd.f32 %v639, %v722
  %v724 = vpop.f32.mrb[0].mxu0
  %v725 = vpop.f32.mrb[0].mxu0
  %v726 = vadd.f32 %v639, %v725
  %v727 = vpop.f32.mrb[0].mxu0
  %728 = vmatprep.mubr.bf16.mxu0 0
  %729 = vmatmul.mubr.bf16.gmra.mrb[0].mxu0 %v604
  %v730 = vpop.f32.mrb[0].mxu0
  %v731 = vadd.f32 %v639, %v730
  %v732 = vpop.f32.mrb[0].mxu0
  %v733 = vpop.f32.mrb[0].mxu0
  %v734 = vadd.f32 %v639, %v733
  %v735 = vpop.f32.mrb[0].mxu0
  %736 = vmatprep.mubr.bf16.mxu0 0
  %737 = vmatmul.mubr.bf16.gmra.mrb[0].mxu0 %v605
  %v738 = vpop.f32.mrb[0].mxu0
  %v739 = vadd.f32 %v639, %v738
  %v740 = vpop.f32.mrb[0].mxu0
  %v741 = vpop.f32.mrb[0].mxu0
  %v742 = vadd.f32 %v639, %v741
  %v743 = vpop.f32.mrb[0].mxu0
  %744 = vmatprep.mubr.bf16.mxu0 0
  %745 = vmatmul.mubr.bf16.gmra.mrb[0].mxu0 %v606
  %v746 = vpop.f32.mrb[0].mxu0
  %v747 = vadd.f32 %v639, %v746
  %v748 = vpop.f32.mrb[0].mxu0
  %v749 = vpop.f32.mrb[0].mxu0
  %v750 = vadd.f32 %v639, %v749
  %v751 = vpop.f32.mrb[0].mxu0
  %752 = vmatprep.mubr.bf16.mxu0 0
  %753 = vmatmul.mubr.bf16.gmra.mrb[0].mxu0 %v607
  %v754 = vpop.f32.mrb[0].mxu0
  %v755 = vadd.f32 %v639, %v754
  %v756 = vpop.f32.mrb[0].mxu0
  %v757 = vpop.f32.mrb[0].mxu0
  %v758 = vadd.f32 %v639, %v757
  %v759 = vpop.f32.mrb[0].mxu0
  %760 = vmatprep.mubr.bf16.mxu0 0
  %761 = vmatmul.mubr.bf16.gmra.mrb[0].mxu0 %v608
  %v762 = vpop.f32.mrb[0].mxu0
  %v763 = vadd.f32 %v639, %v762
  %v764 = vpop.f32.mrb[0].mxu0
  %v765 = vpop.f32.mrb[0].mxu0
  %v766 = vadd.f32 %v639, %v765
  %v767 = vpop.f32.mrb[0].mxu0
  %768 = vmatprep.mubr.bf16.mxu0 0
  %769 = vmatmul.mubr.bf16.gmra.mrb[0].mxu0 %v609
  %v770 = vpop.f32.mrb[0].mxu0
  %v771 = vadd.f32 %v639, %v770
  %v772 = vpop.f32.mrb[0].mxu0
  %v773 = vpop.f32.mrb[0].mxu0
  %v774 = vadd.f32 %v639, %v773
  %v775 = vpop.f32.mrb[0].mxu0
  %776 = vmatprep.mubr.bf16.mxu0 0
  %777 = vmatmul.mubr.bf16.gmra.mrb[0].mxu0 %v610
  %v778 = vpop.f32.mrb[0].mxu0
  %v779 = vadd.f32 %v639, %v778
  %v780 = vpop.f32.mrb[0].mxu0
  %v781 = vpop.f32.mrb[0].mxu0
  %v782 = vadd.f32 %v639, %v781
  %v783 = vpop.f32.mrb[0].mxu0
  %784 = vmatprep.mubr.bf16.mxu0 0
  %785 = vmatmul.mubr.bf16.gmra.mrb[0].mxu0 %v611
  %v786 = vpop.f32.mrb[0].mxu0
  %v787 = vadd.f32 %v639, %v786
  %v788 = vpop.f32.mrb[0].mxu0
  %v789 = vpop.f32.mrb[0].mxu0
  %v790 = vadd.f32 %v639, %v789
  %v791 = vpop.f32.mrb[0].mxu0
  %792 = vmatprep.mubr.bf16.mxu0 0
  %793 = vmatmul.mubr.bf16.gmra.mrb[0].mxu0 %v612
  %v794 = vpop.f32.mrb[0].mxu0
  %v795 = vadd.f32 %v639, %v794
  %v796 = vpop.f32.mrb[0].mxu0
  %v797 = vpop.f32.mrb[0].mxu0
  %v798 = vadd.f32 %v639, %v797
  %v799 = vpop.f32.mrb[0].mxu0
  %800 = vmatprep.mubr.bf16.mxu0 0
  %801 = vmatmul.mubr.bf16.gmra.mrb[0].mxu0 %v613
  %v802 = vpop.f32.mrb[0].mxu0
  %v803 = vadd.f32 %v639, %v802
  %v804 = vpop.f32.mrb[0].mxu0
  %v805 = vpop.f32.mrb[0].mxu0
  %v806 = vadd.f32 %v639, %v805
  %v807 = vpop.f32.mrb[0].mxu0
  %808 = vmatprep.mubr.bf16.mxu0 0
  %809 = vmatmul.mubr.bf16.gmra.mrb[0].mxu0 %v614
  %v810 = vpop.f32.mrb[0].mxu0
  %v811 = vadd.f32 %v639, %v810
  %v812 = vpop.f32.mrb[0].mxu0
  %v813 = vpop.f32.mrb[0].mxu0
  %v814 = vadd.f32 %v639, %v813
  %v815 = vpop.f32.mrb[0].mxu0
  %816 = vmatprep.mubr.bf16.mxu0 0
  %817 = vmatmul.mubr.bf16.gmra.mrb[0].mxu0 %v615
  %v818 = vpop.f32.mrb[0].mxu0
  %v819 = vadd.f32 %v639, %v818
  %v820 = vpop.f32.mrb[0].mxu0
  %v821 = vpop.f32.mrb[0].mxu0
  %v822 = vadd.f32 %v639, %v821
  %v823 = vpop.f32.mrb[0].mxu0
  %824 = vmatprep.mubr.bf16.mxu0 0
  %825 = vmatmul.mubr.bf16.gmra.mrb[0].mxu0 %v616
  %v826 = vpop.f32.mrb[0].mxu0
  %v827 = vadd.f32 %v639, %v826
  %v828 = vpop.f32.mrb[0].mxu0
  %v829 = vpop.f32.mrb[0].mxu0
  %v830 = vadd.f32 %v639, %v829
  %v831 = vpop.f32.mrb[0].mxu0
  %832 = vmatprep.mubr.bf16.mxu0 0
  %833 = vmatmul.mubr.bf16.gmra.mrb[0].mxu0 %v617
  %v834 = vpop.f32.mrb[0].mxu0
  %v835 = vadd.f32 %v639, %v834
  %v836 = vpop.f32.mrb[0].mxu0
  %v837 = vpop.f32.mrb[0].mxu0
  %v838 = vadd.f32 %v639, %v837
  %v839 = vpop.f32.mrb[0].mxu0
  %840 = vmatprep.mubr.bf16.mxu0 0
  %841 = vmatmul.mubr.bf16.gmra.mrb[0].mxu0 %v618
  %v842 = vpop.f32.mrb[0].mxu0
  %v843 = vadd.f32 %v639, %v842
  %v844 = vpop.f32.mrb[0].mxu0
  %v845 = vpop.f32.mrb[0].mxu0
  %v846 = vadd.f32 %v639, %v845
  %v847 = vpop.f32.mrb[0].mxu0
  %848 = vdwg.mxu0
  %849 = vst [vmem:[%s3] sm:$0xff] %v723
  %850 = vst [vmem:[%s3 + $0x8] sm:$0xff] %v726
  %851 = vst [vmem:[%s3 + $0x10] sm:$0xff] %v731
  %852 = vst [vmem:[%s3 + $0x18] sm:$0xff] %v734
  %853 = vst [vmem:[%s3 + $0x20] sm:$0xff] %v739
  %854 = vst [vmem:[%s3 + $0x28] sm:$0xff] %v742
  %855 = vst [vmem:[%s3 + $0x30] sm:$0xff] %v747
  %856 = vst [vmem:[%s3 + $0x38] sm:$0xff] %v750
  %857 = vst [vmem:[%s3 + $0x40] sm:$0xff] %v755
  %858 = vst [vmem:[%s3 + $0x48] sm:$0xff] %v758
  %859 = vst [vmem:[%s3 + $0x50] sm:$0xff] %v763
  %860 = vst [vmem:[%s3 + $0x58] sm:$0xff] %v766
  %861 = vst [vmem:[%s3 + $0x60] sm:$0xff] %v771
  %862 = vst [vmem:[%s3 + $0x68] sm:$0xff] %v774
  %863 = vst [vmem:[%s3 + $0x70] sm:$0xff] %v779
  %864 = vst [vmem:[%s3 + $0x78] sm:$0xff] %v782
  %865 = vst [vmem:[%s3 + $0x80] sm:$0xff] %v787
  %866 = vst [vmem:[%s3 + $0x88] sm:$0xff] %v790
  %867 = vst [vmem:[%s3 + $0x90] sm:$0xff] %v795
  %868 = vst [vmem:[%s3 + $0x98] sm:$0xff] %v798
  %869 = vst [vmem:[%s3 + $0xa0] sm:$0xff] %v803
  %870 = vst [vmem:[%s3 + $0xa8] sm:$0xff] %v806
  %871 = vst [vmem:[%s3 + $0xb0] sm:$0xff] %v811
  %872 = vst [vmem:[%s3 + $0xb8] sm:$0xff] %v814
  %873 = vst [vmem:[%s3 + $0xc0] sm:$0xff] %v819
  %874 = vst [vmem:[%s3 + $0xc8] sm:$0xff] %v822
  %875 = vst [vmem:[%s3 + $0xd0] sm:$0xff] %v827
  %876 = vst [vmem:[%s3 + $0xd8] sm:$0xff] %v830
  %877 = vst [vmem:[%s3 + $0xe0] sm:$0xff] %v835
  %878 = vst [vmem:[%s3 + $0xe8] sm:$0xff] %v838
  %879 = vst [vmem:[%s3 + $0xf0] sm:$0xff] %v843
  %880 = vst [vmem:[%s3 + $0xf8] sm:$0xff] %v846
  // Predicated region
  $region14: #{dqn_forward.1} parent=0 // pred_check
    _
  $region15: #{dqn_forward.1} parent=0 // pred_check_branch
    %882 = sbr.rel (0) target = $region17
  $region16: #{dqn_forward.1} parent=0 // pred_region
    _
  $region17: #{dqn_forward.1} parent=0 // pred_fallthru
    _
  // Predicated region
  $region18: #{dqn_forward.1} parent=0 // pred_check
    _
  $region19: #{dqn_forward.1} parent=0 // pred_check_branch
    %884 = sbr.rel (0) target = $region21
  $region20: #{dqn_forward.1} parent=0 // pred_region
    _
  $region21: #{dqn_forward.1} parent=0 // pred_fallthru
    _

</llo_original>
